<compile_context>
chip_gen: v5e
topology: v5e:2x2
jax: 0.10.0
libtpu: 0.0.40
codegen_flags: <defaults>
</compile_context>

<pallas_src>
import jax
import jax.numpy as jnp
from jax import lax
from jax.experimental import pallas as pl
from jax.experimental.pallas import tpu as pltpu


def _round_up(a, b):
    return (a + b - 1) // b * b


def _cat_linear_kernel(sel_ref, xl_idx_ref, xt_idx_ref,   # scalar prefetch (SMEM)
                       xl_ref, xt_ref, w_ref, b_ref,      # VMEM inputs
                       o_ref):                            # VMEM output
    # xl_ref/xt_ref: (tm, H)   w_ref: (Hp, H) = (out, in)   b_ref: (1, Hp)
    # o_ref: (tm, Hp)
    i = pl.program_id(0)
    use_t = sel_ref[i]                                    # 0 -> x_l tile, 1 -> x_t tile
    x = jnp.where(use_t == 1, xt_ref[...], xl_ref[...])   # (tm, H) source select (VPU)
    # x @ W.T : contract dim 1 of x with dim 1 of W (no host-side transpose).
    acc = lax.dot_general(
        x, w_ref[...],
        dimension_numbers=(((1,), (1,)), ((), ())),
        preferred_element_type=jnp.float32)               # (tm, Hp) f32
    o_ref[...] = (acc + b_ref[...]).astype(o_ref.dtype)


def cat_complex_linear(x_l, x_t, weight, bias, *, tm=256):
    """Pallas implementation of CatComplexLinear.forward.

    x_l:    (N1, H)  -- h_l.x
    x_t:    (N2, H)  -- h_t['embedding_1']
    weight: (H, H)   -- nn.Linear weight, (out, in) layout
    bias:   (H,)
    returns (N1+N2, H)
    """
    n1, h = x_l.shape
    n2, h2 = x_t.shape
    assert h2 == h and weight.shape == (h, h) and bias.shape == (h,)
    assert n1 > 0 and n2 > 0

    # Row tile: as large as useful, multiple of 8 (sublane), clamped for tiny inputs.
    tm = max(8, _round_up(min(tm, max(n1, n2)), 8))

    # Lane-dense output: pad the *output* dim of W and the bias to a multiple of 128.
    hp = _round_up(h, 128)
    w = weight if hp == h else jnp.pad(weight, ((0, hp - h), (0, 0)))
    b = (bias if hp == h else jnp.pad(bias, (0, hp - h))).reshape(1, hp)

    # Pad rows of each source up to a tile multiple (no-op when already aligned).
    n1p, n2p = _round_up(n1, tm), _round_up(n2, tm)
    xl = x_l if n1p == n1 else jnp.pad(x_l, ((0, n1p - n1), (0, 0)))
    xt = x_t if n2p == n2 else jnp.pad(x_t, ((0, n2p - n2), (0, 0)))

    t1, t2 = n1p // tm, n2p // tm
    nt = t1 + t2

    # Scalar-prefetch tables: per-tile source selector + per-source block index.
    # Clamped indices keep the unused input's block index constant across steps,
    # so its DMA is skipped (block revisiting) -> ~no extra HBM traffic.
    tile = jnp.arange(nt, dtype=jnp.int32)
    sel = (tile >= t1).astype(jnp.int32)
    xl_idx = jnp.clip(tile, 0, t1 - 1).astype(jnp.int32)
    xt_idx = jnp.clip(tile - t1, 0, t2 - 1).astype(jnp.int32)

    out = pl.pallas_call(
        _cat_linear_kernel,
        out_shape=jax.ShapeDtypeStruct((nt * tm, hp), x_l.dtype),
        grid_spec=pltpu.PrefetchScalarGridSpec(
            num_scalar_prefetch=3,
            grid=(nt,),
            in_specs=[
                pl.BlockSpec((tm, h), lambda i, s, li, ti: (li[i], 0)),  # x_l row tile
                pl.BlockSpec((tm, h), lambda i, s, li, ti: (ti[i], 0)),  # x_t row tile
                pl.BlockSpec((hp, h), lambda i, s, li, ti: (0, 0)),      # weight (out,in)
                pl.BlockSpec((1, hp), lambda i, s, li, ti: (0, 0)),      # bias
            ],
            out_specs=pl.BlockSpec((tm, hp), lambda i, s, li, ti: (i, 0)),
        ),
        compiler_params=pltpu.CompilerParams(
            dimension_semantics=("parallel",),
            vmem_limit_bytes=64 * 1024 * 1024,
        ),
    )(sel, xl_idx, xt_idx, xl, xt, w, b)

    # Drop row padding (stitch the two source regions) and lane padding.
    if n1p == n1 and n2p == n2:
        res = out
    else:
        res = jnp.concatenate([out[:n1], out[n1p:n1p + n2]], axis=0)
    if hp != h:
        res = res[:, :h]
    return res


def _reference(x_l, x_t, weight, bias):
    x = jnp.concatenate([x_l, x_t], axis=0)
    return x @ weight.T + bias


if __name__ == "__main__":
    key = jax.random.PRNGKey(0)
    k1, k2, k3, k4, k5, k6 = jax.random.split(key, 6)

    hidden_dim = 32          # config.encoder.complex_net.hidden_dim
    n_ligand = 8             # rows of h_l.x
    n_target = 8             # rows of h_t['embedding_1']

    x_l = jax.random.normal(k1, (n_ligand, hidden_dim), dtype=jnp.float32)
    x_t = jax.random.normal(k2, (n_target, hidden_dim), dtype=jnp.float32)

    # Deterministic parameter init (synthetic; shapes from nn.Linear(H, H)).
    bound = 1.0 / jnp.sqrt(hidden_dim)
    weight = jax.random.uniform(k3, (hidden_dim, hidden_dim),
                                minval=-bound, maxval=bound, dtype=jnp.float32)
    bias = jax.random.uniform(k4, (hidden_dim,),
                              minval=-bound, maxval=bound, dtype=jnp.float32)

    out = cat_complex_linear(x_l, x_t, weight, bias)
    out = jax.block_until_ready(out)
    ref = _reference(x_l, x_t, weight, bias)
    assert out.shape == (n_ligand + n_target, hidden_dim)
    assert jnp.allclose(out, ref, atol=1e-4, rtol=1e-4), "mismatch vs reference"

    # Second check: non-tile-aligned node counts (exercises padding + stitching).
    x_l2 = jax.random.normal(k5, (10, hidden_dim), dtype=jnp.float32)
    x_t2 = jax.random.normal(k6, (13, hidden_dim), dtype=jnp.float32)
    out2 = jax.block_until_ready(cat_complex_linear(x_l2, x_t2, weight, bias))
    ref2 = _reference(x_l2, x_t2, weight, bias)
    assert out2.shape == (23, hidden_dim)
    assert jnp.allclose(out2, ref2, atol=1e-4, rtol=1e-4), "mismatch vs reference (ragged)"

    print("KERNEL_OK")
</pallas_src>

<mosaic_0001>
module attributes {stable_mosaic.version = 11 : i64} {
  func.func @_cat_linear_kernel(%arg0: i32, %arg1: memref<2xi32, #tpu.memory_space<smem>>, %arg2: memref<2xi32, #tpu.memory_space<smem>>, %arg3: memref<2xi32, #tpu.memory_space<smem>>, %arg4: memref<8x32xf32, #tpu.memory_space<vmem>>, %arg5: memref<8x32xf32, #tpu.memory_space<vmem>>, %arg6: memref<128x32xf32, #tpu.memory_space<vmem>>, %arg7: memref<1x128xf32, #tpu.memory_space<vmem>>, %arg8: memref<8x128xf32, #tpu.memory_space<vmem>>) attributes {dimension_semantics = [#tpu.dimension_semantics<parallel>], iteration_bounds = array<i64: 2>, scalar_prefetch = 3 : i64, scratch_operands = 0 : i64, tpu.core_type = #tpu.core_type<tc>, window_params = [{transform_indices = @transform_0, window_bounds = array<i64: 8, 32>}, {transform_indices = @transform_1, window_bounds = array<i64: 8, 32>}, {pipeline_mode = #tpu.pipeline_mode<synchronous>, transform_indices = @transform_2, window_bounds = array<i64: 128, 32>}, {pipeline_mode = #tpu.pipeline_mode<synchronous>, transform_indices = @transform_3, window_bounds = array<i64: 1, 128>}, {transform_indices = @transform_4, window_bounds = array<i64: 8, 128>}]} {
    %0 = arith.index_cast %arg0 : i32 to index
    %1 = memref.load %arg1[%0] : memref<2xi32, #tpu.memory_space<smem>>
    %c1_i32 = arith.constant 1 : i32
    %2 = arith.cmpi eq, %1, %c1_i32 : i32
    %c0 = arith.constant 0 : index
    %c0_0 = arith.constant 0 : index
    %3 = vector.load %arg5[%c0, %c0_0] : memref<8x32xf32, #tpu.memory_space<vmem>>, vector<8x32xf32>
    %c0_1 = arith.constant 0 : index
    %c0_2 = arith.constant 0 : index
    %4 = vector.load %arg4[%c0_1, %c0_2] : memref<8x32xf32, #tpu.memory_space<vmem>>, vector<8x32xf32>
    %5 = arith.select %2, %3, %4 : vector<8x32xf32>
    %c0_3 = arith.constant 0 : index
    %c0_4 = arith.constant 0 : index
    %6 = vector.load %arg6[%c0_3, %c0_4] : memref<128x32xf32, #tpu.memory_space<vmem>>, vector<128x32xf32>
    %cst = arith.constant dense<0.000000e+00> : vector<8x128xf32>
    %7 = tpu.matmul %5, %6, %cst {dimension_numbers = #tpu.dot_dimension_numbers<[1], [1], [0], [0], [0, 0, 1, 0], [], []>} : vector<8x32xf32>, vector<128x32xf32>, vector<8x128xf32> -> vector<8x128xf32>
    %c0_5 = arith.constant 0 : index
    %c0_6 = arith.constant 0 : index
    %8 = vector.load %arg7[%c0_5, %c0_6] : memref<1x128xf32, #tpu.memory_space<vmem>>, vector<1x128xf32>
    %9 = vector.broadcast %8 : vector<1x128xf32> to vector<8x128xf32>
    %10 = arith.addf %7, %9 : vector<8x128xf32>
    %c0_7 = arith.constant 0 : index
    %c0_8 = arith.constant 0 : index
    %11 = vector.load %arg8[%c0_7, %c0_8] : memref<8x128xf32, #tpu.memory_space<vmem>>, vector<8x128xf32>
    tpu.vector_store %arg8[%c0_7, %c0_8], %10 {strides = array<i32>} : memref<8x128xf32, #tpu.memory_space<vmem>>, vector<8x128xf32>,
    return
  }
  func.func @transform_0(%arg0: i32, %arg1: memref<2xi32, #tpu.memory_space<smem>>, %arg2: memref<2xi32, #tpu.memory_space<smem>>, %arg3: memref<2xi32, #tpu.memory_space<smem>>) -> (i32, i32) {
    %0 = arith.index_cast %arg0 : i32 to index
    %1 = memref.load %arg2[%0] : memref<2xi32, #tpu.memory_space<smem>>
    %c0_i32 = arith.constant 0 : i32
    %c0_i32_0 = arith.constant 0 : i32
    return %1, %c0_i32 : i32, i32
  }
  func.func @transform_1(%arg0: i32, %arg1: memref<2xi32, #tpu.memory_space<smem>>, %arg2: memref<2xi32, #tpu.memory_space<smem>>, %arg3: memref<2xi32, #tpu.memory_space<smem>>) -> (i32, i32) {
    %0 = arith.index_cast %arg0 : i32 to index
    %1 = memref.load %arg3[%0] : memref<2xi32, #tpu.memory_space<smem>>
    %c0_i32 = arith.constant 0 : i32
    %c0_i32_0 = arith.constant 0 : i32
    return %1, %c0_i32 : i32, i32
  }
  func.func @transform_2(%arg0: i32, %arg1: memref<2xi32, #tpu.memory_space<smem>>, %arg2: memref<2xi32, #tpu.memory_space<smem>>, %arg3: memref<2xi32, #tpu.memory_space<smem>>) -> (i32, i32) {
    %c0_i32 = arith.constant 0 : i32
    %c0_i32_0 = arith.constant 0 : i32
    %c0_i32_1 = arith.constant 0 : i32
    return %c0_i32, %c0_i32_0 : i32, i32
  }
  func.func @transform_3(%arg0: i32, %arg1: memref<2xi32, #tpu.memory_space<smem>>, %arg2: memref<2xi32, #tpu.memory_space<smem>>, %arg3: memref<2xi32, #tpu.memory_space<smem>>) -> (i32, i32) {
    %c0_i32 = arith.constant 0 : i32
    %c0_i32_0 = arith.constant 0 : i32
    %c0_i32_1 = arith.constant 0 : i32
    return %c0_i32, %c0_i32_0 : i32, i32
  }
  func.func @transform_4(%arg0: i32, %arg1: memref<2xi32, #tpu.memory_space<smem>>, %arg2: memref<2xi32, #tpu.memory_space<smem>>, %arg3: memref<2xi32, #tpu.memory_space<smem>>) -> (i32, i32) {
    %c0_i32 = arith.constant 0 : i32
    %c0_i32_0 = arith.constant 0 : i32
    return %arg0, %c0_i32 : i32, i32
  }
}

</mosaic_0001>

<llo_original>
// kernel: tpu_custom_call.1
$region0: #{tpu_custom_call.1}
  #allocation0 [shape = 'u32[]', space=smem, size = 0x4, offset = 0x4, fixed_abs, tag = 'smem constant byte address 0x4 - core index']
  #allocation1 [shape = 'u32[72,128]{1,0:T(1,128)}', space=vmem, size = 0x9000, scoped, tag = 'internal scratch']
  #allocation2 [shape = 's32[1]{0}', space=sflag, size = 0x4, scoped, tag = 'scoped memory for tpu_custom_call.1']
  #allocation3 [shape = 'u8[512]{0}', space=smem, size = 0x200, scoped, tag = 'prefetched SMEM operand 0']
  #allocation4 [shape = 'u8[512]{0}', space=smem, size = 0x200, scoped, tag = 'prefetched SMEM operand 1']
  #allocation5 [shape = 'u8[512]{0}', space=smem, size = 0x200, scoped, tag = 'prefetched SMEM operand 2']
  %s0 = inlined_call_operand.vmem [shape: s32[2], index: 0, kind: input, shape index: {}]
  %s1 = inlined_call_operand.vmem [shape: s32[2], index: 1, kind: input, shape index: {}]
  %s2 = inlined_call_operand.vmem [shape: s32[2], index: 2, kind: input, shape index: {}]
  %s3 = inlined_call_operand.vmem [shape: f32[8,32], index: 3, kind: input, shape index: {}]
  %s4 = inlined_call_operand.vmem [shape: f32[8,32], index: 4, kind: input, shape index: {}]
  %s5 = inlined_call_operand.vmem [shape: f32[128,32], index: 5, kind: input, shape index: {}]
  %s6 = inlined_call_operand.vmem [shape: f32[1,128], index: 6, kind: input, shape index: {}]
  %s7 = inlined_call_operand.hbm [shape: f32[16,128], index: 7, kind: output, shape index: {}]
  %s8 = sld [smem:[#allocation0]]
  $region49: #{tpu_custom_call.1} parent=0
    _
  %s10 = ssub.s32 1, %s8
  %s11 = scalar_select 0, %s10, %s8
  %s13 = sshll.u32 %s0, 4
  %s14 = int_to_ptr.vmem [resolvable:$true] %s13
  %16 = dma.vmem_to_smem %s14, 16, [#allocation3], [#allocation2]
  %s18 = sshll.u32 %s1, 4
  %s19 = int_to_ptr.vmem [resolvable:$true] %s18
  %21 = dma.vmem_to_smem %s19, 16, [#allocation4], [#allocation2]
  %s23 = sshll.u32 %s2, 4
  %s24 = int_to_ptr.vmem [resolvable:$true] %s23
  %26 = dma.vmem_to_smem %s24, 16, [#allocation5], [#allocation2]
  %28 = dma.done [#allocation2], 48
  %29 = sfence
  $region1: #{tpu_custom_call.1} parent=0
    #allocation6 [shape = 'u8[8192]{0}', space=vmem, size = 0x2000, scoped, tag = 'output window, operand 0']
    #allocation7 [shape = 's32[2]{0}', space=sflag, size = 0x8, scoped, tag = 'scoped memory for tpu_custom_call.1']
    %30 = vsyncpa [#allocation7], 0
    %s31 = scalar_lea.sflag [#allocation7], 1
    %32 = vsyncpa %s31, 0
    loop: start=0, step=1, limit=4
    $region2: #{tpu_custom_call.1} parent=1 // loop_pre_header
      _
    $region3: #{tpu_custom_call.1} parent=1 // loop_header
      %s34 = sphi 0, %s38
      %p35 = scmp.ge.s32.totalorder %s34, 4
      %s46 = sphi 0, %s48
      %s49 = sphi 0, %s46
      %s50 = sphi 0, %s49
      %s66 = sphi 0, %s50
      %s74 = sphi 0, %s76
      %s77 = sphi 0, %s74
      %s78 = sphi 0, %s77
      %s94 = sphi 0, %s78
      %s98 = sphi 0, %s98
      %s100 = sphi 0, %s98
      %s101 = sphi 0, %s100
      %s115 = sphi 0, %s101
      %s119 = sphi 0, %s119
      %s121 = sphi 0, %s119
      %s122 = sphi 0, %s121
      %s136 = sphi 0, %s122
      %s142 = sphi 0, %s144
      %s145 = sphi 0, %s142
      %s146 = sphi 0, %s145
      %s162 = sphi 0, %s146
    $region4: #{tpu_custom_call.1} parent=1 // loop_header_branch
      %37 = sbr.rel (%p35) target = $region8
    $region5: #{tpu_custom_call.1} parent=1 // loop_body
      %s39 = ssub.s32 %s34, 1
      %s40 = ssub.s32 %s34, 2
      %s41 = sadd.s32 %s34, 1
      %s42 = sld [smem:[#allocation4 + %s34]]
      %s43 = sld [smem:[#allocation4 + %s41]]
      %s44 = ssub.s32 %s42, %s43
      %p45 = scmp.eq.s32.totalorder %s44, 0
      %s47 = sadd.s32 %s46, 1
      %s48 = scalar_select %p45, %s46, %s47
      %p51 = pneg %p45
      %p52 = scmp.eq.s32.totalorder %s34, 1
      %p53 = por %p51, %p52
      %p54 = scmp.ne.s32.totalorder %s46, %s49
      %p55 = scmp.eq.s32.totalorder %s34, 0
      %p56 = por %p54, %p55
      %p57 = scmp.ne.s32.totalorder %s46, %s49
      %p58 = scmp.eq.s32.totalorder %s39, 1
      %p59 = por %p57, %p58
      %p60 = scmp.ne.s32.totalorder %s49, %s50
      %p61 = scmp.eq.s32.totalorder %s39, 0
      %p62 = por %p60, %p61
      %p63 = scmp.ne.s32.totalorder %s49, %s50
      %p64 = scmp.eq.s32.totalorder %s40, 1
      %p65 = por %p63, %p64
      %p67 = scmp.ne.s32.totalorder %s50, %s66
      %p68 = scmp.eq.s32.totalorder %s40, 0
      %p69 = por %p67, %p68
      %s70 = sld [smem:[#allocation5 + %s34]]
      %s71 = sld [smem:[#allocation5 + %s41]]
      %s72 = ssub.s32 %s70, %s71
      %p73 = scmp.eq.s32.totalorder %s72, 0
      %s75 = sadd.s32 %s74, 1
      %s76 = scalar_select %p73, %s74, %s75
      %p79 = pneg %p73
      %p80 = scmp.eq.s32.totalorder %s34, 1
      %p81 = por %p79, %p80
      %p82 = scmp.ne.s32.totalorder %s74, %s77
      %p83 = scmp.eq.s32.totalorder %s34, 0
      %p84 = por %p82, %p83
      %p85 = scmp.ne.s32.totalorder %s74, %s77
      %p86 = scmp.eq.s32.totalorder %s39, 1
      %p87 = por %p85, %p86
      %p88 = scmp.ne.s32.totalorder %s77, %s78
      %p89 = scmp.eq.s32.totalorder %s39, 0
      %p90 = por %p88, %p89
      %p91 = scmp.ne.s32.totalorder %s77, %s78
      %p92 = scmp.eq.s32.totalorder %s40, 1
      %p93 = por %p91, %p92
      %p95 = scmp.ne.s32.totalorder %s78, %s94
      %p96 = scmp.eq.s32.totalorder %s40, 0
      %p97 = por %p95, %p96
      %s99 = sadd.s32 %s98, 1
      %p102 = scmp.eq.s32.totalorder %s34, 1
      %p103 = scmp.ne.s32.totalorder %s98, %s100
      %p104 = scmp.eq.s32.totalorder %s34, 0
      %p105 = por %p103, %p104
      %p106 = scmp.ne.s32.totalorder %s98, %s100
      %p107 = scmp.eq.s32.totalorder %s39, 1
      %p108 = por %p106, %p107
      %p109 = scmp.ne.s32.totalorder %s100, %s101
      %p110 = scmp.eq.s32.totalorder %s39, 0
      %p111 = por %p109, %p110
      %p112 = scmp.ne.s32.totalorder %s100, %s101
      %p113 = scmp.eq.s32.totalorder %s40, 1
      %p114 = por %p112, %p113
      %p116 = scmp.ne.s32.totalorder %s101, %s115
      %p117 = scmp.eq.s32.totalorder %s40, 0
      %p118 = por %p116, %p117
      %s120 = sadd.s32 %s119, 1
      %p123 = scmp.eq.s32.totalorder %s34, 1
      %p124 = scmp.ne.s32.totalorder %s119, %s121
      %p125 = scmp.eq.s32.totalorder %s34, 0
      %p126 = por %p124, %p125
      %p127 = scmp.ne.s32.totalorder %s119, %s121
      %p128 = scmp.eq.s32.totalorder %s39, 1
      %p129 = por %p127, %p128
      %p130 = scmp.ne.s32.totalorder %s121, %s122
      %p131 = scmp.eq.s32.totalorder %s39, 0
      %p132 = por %p130, %p131
      %p133 = scmp.ne.s32.totalorder %s121, %s122
      %p134 = scmp.eq.s32.totalorder %s40, 1
      %p135 = por %p133, %p134
      %p137 = scmp.ne.s32.totalorder %s122, %s136
      %p138 = scmp.eq.s32.totalorder %s40, 0
      %p139 = por %p137, %p138
      %s140 = ssub.s32 %s34, %s41
      %p141 = scmp.eq.s32.totalorder %s140, 0
      %s143 = sadd.s32 %s142, 1
      %s144 = scalar_select %p141, %s142, %s143
      %p147 = pneg %p141
      %p148 = scmp.eq.s32.totalorder %s34, 1
      %p149 = por %p147, %p148
      %p150 = scmp.ne.s32.totalorder %s142, %s145
      %p151 = scmp.eq.s32.totalorder %s34, 0
      %p152 = por %p150, %p151
      %p153 = scmp.ne.s32.totalorder %s142, %s145
      %p154 = scmp.eq.s32.totalorder %s39, 1
      %p155 = por %p153, %p154
      %p156 = scmp.ne.s32.totalorder %s145, %s146
      %p157 = scmp.eq.s32.totalorder %s39, 0
      %p158 = por %p156, %p157
      %p159 = scmp.ne.s32.totalorder %s145, %s146
      %p160 = scmp.eq.s32.totalorder %s40, 1
      %p161 = por %p159, %p160
      %p163 = scmp.ne.s32.totalorder %s146, %s162
      %p164 = scmp.eq.s32.totalorder %s40, 0
      %p165 = por %p163, %p164
      %p166 = scmp.le.s32.totalorder 1, %s34
      %p167 = scmp.lt.s32.totalorder %s34, 3
      %p168 = pnand %p166, %p167
      %p169 = pneg %p168
      // Predicated region
      $region9: #{tpu_custom_call.1} parent=5 // pred_check
        _
      $region10: #{tpu_custom_call.1} parent=5 // pred_check_branch
        %171 = sbr.rel (%p168) target = $region12
      $region11: #{tpu_custom_call.1} parent=5 // pred_region
        %s172 = ssub.s32 %s34, 1
        // Predicated region
        $region13: #{tpu_custom_call.1} parent=11 // pred_check
          %p173 = pneg %p111
        $region14: #{tpu_custom_call.1} parent=11 // pred_check_branch
          %175 = sbr.rel (%p173) target = $region16
        $region15: #{tpu_custom_call.1} parent=11 // pred_region
          _
        $region16: #{tpu_custom_call.1} parent=11 // pred_fallthru
          _
        // Predicated region
        $region17: #{tpu_custom_call.1} parent=11 // pred_check
          %p176 = pneg %p132
        $region18: #{tpu_custom_call.1} parent=11 // pred_check_branch
          %178 = sbr.rel (%p176) target = $region20
        $region19: #{tpu_custom_call.1} parent=11 // pred_region
          _
        $region20: #{tpu_custom_call.1} parent=11 // pred_fallthru
          _
      $region12: #{tpu_custom_call.1} parent=5 // pred_fallthru
        _
      %p179 = scmp.lt.s32.totalorder %s34, 2
      // Predicated region
      $region21: #{tpu_custom_call.1} parent=5 // pred_check
        %p180 = pneg %p179
      $region22: #{tpu_custom_call.1} parent=5 // pred_check_branch
        %182 = sbr.rel (%p180) target = $region24
      $region23: #{tpu_custom_call.1} parent=5 // pred_region
        // Predicated region
        $region25: #{tpu_custom_call.1} parent=23 // pred_check
          %p183 = pneg %p56
        $region26: #{tpu_custom_call.1} parent=23 // pred_check_branch
          %185 = sbr.rel (%p183) target = $region28
        $region27: #{tpu_custom_call.1} parent=23 // pred_region
          %s186 = sld [smem:[#allocation4 + %s34]]
          %p187 = scmp.lt.s32.totalorder %s186, 0
          %s188 = scalar_select %p187, %s186, 0
          %s189 = smul.addr %s188, 8
          %s190 = scalar_lea.vmem %s3, %s189
          %s191 = sld [smem:[#allocation4 + %s34]]
        $region28: #{tpu_custom_call.1} parent=23 // pred_fallthru
          _
        // Predicated region
        $region29: #{tpu_custom_call.1} parent=23 // pred_check
          %p192 = pneg %p84
        $region30: #{tpu_custom_call.1} parent=23 // pred_check_branch
          %194 = sbr.rel (%p192) target = $region32
        $region31: #{tpu_custom_call.1} parent=23 // pred_region
          %s195 = sld [smem:[#allocation5 + %s34]]
          %p196 = scmp.lt.s32.totalorder %s195, 0
          %s197 = scalar_select %p196, %s195, 0
          %s198 = smul.addr %s197, 8
          %s199 = scalar_lea.vmem %s4, %s198
          %s200 = sld [smem:[#allocation5 + %s34]]
        $region32: #{tpu_custom_call.1} parent=23 // pred_fallthru
          _
      $region24: #{tpu_custom_call.1} parent=5 // pred_fallthru
        _
      %p201 = scmp.le.s32.totalorder 1, %s34
      %p202 = scmp.lt.s32.totalorder %s34, 3
      %p203 = pnand %p201, %p202
      %p204 = pneg %p203
      // Predicated region
      $region33: #{tpu_custom_call.1} parent=5 // pred_check
        _
      $region34: #{tpu_custom_call.1} parent=5 // pred_check_branch
        %206 = sbr.rel (%p203) target = $region36
      $region35: #{tpu_custom_call.1} parent=5 // pred_region
        %s207 = ssub.s32 %s34, 1
        %s208 = sld [smem:[#allocation4 + %s39]]
        %p209 = scmp.lt.s32.totalorder %s208, 0
        %s210 = scalar_select %p209, %s208, 0
        %s211 = smul.addr %s210, 8
        %s212 = scalar_lea.vmem %s3, %s211
        %p213 = pneg %p62
        %p214 = pneg %p59
        %s215 = sld [smem:[#allocation5 + %s39]]
        %p216 = scmp.lt.s32.totalorder %s215, 0
        %s217 = scalar_select %p216, %s215, 0
        %s218 = smul.addr %s217, 8
        %s219 = scalar_lea.vmem %s4, %s218
        %p220 = pneg %p90
        %p221 = pneg %p87
        %p222 = pneg %p111
        %p223 = pneg %p108
        %p224 = pneg %p132
        %p225 = pneg %p129
        %p226 = pneg %p158
        %p227 = pneg %p155
        %s228 = sand.u32 %s145, 1
        %s229 = scalar_lea.sflag [#allocation7], %s228
        %s230 = sand.u32 %s145, 1
        %s231 = smul.addr %s230, 8
        %s232 = scalar_lea.vmem [#allocation6], %s231
        %s233 = sld [smem:[#allocation4 + %s39]]
        %p234 = scmp.lt.s32.totalorder %s233, 0
        %s235 = scalar_select %p234, %s233, 0
        %s236 = smul.addr %s235, 8
        %s237 = scalar_lea.vmem %s3, %s236
        %s238 = sld [smem:[#allocation4 + %s39]]
        %s239 = sld [smem:[#allocation5 + %s39]]
        %p240 = scmp.lt.s32.totalorder %s239, 0
        %s241 = scalar_select %p240, %s239, 0
        %s242 = smul.addr %s241, 8
        %s243 = scalar_lea.vmem %s4, %s242
        %s244 = sld [smem:[#allocation5 + %s39]]
        %s245 = sld [smem:[#allocation3 + %s39]]
        %p246 = scmp.eq.s32.totalorder %s245, 1
        %v247 = vld [vmem:[%s243] sm:$0xff]
        %v248 = vld [vmem:[%s237] sm:$0xff]
        %s249 = scalar_select %p246, 1, 0
        %v250 = vstv %s249
        %vm251 = vcmp.eq.s32.totalorder %v250, 1
        %v252 = vsel %vm251, %v247, %v248
        %v253 = vld [vmem:[%s5] sm:$0xff]
        %v254 = vld [vmem:[%s5 + $0x8] sm:$0xff]
        %v255 = vld [vmem:[%s5 + $0x10] sm:$0xff]
        %v256 = vld [vmem:[%s5 + $0x18] sm:$0xff]
        %v257 = vld [vmem:[%s5 + $0x20] sm:$0xff]
        %v258 = vld [vmem:[%s5 + $0x28] sm:$0xff]
        %v259 = vld [vmem:[%s5 + $0x30] sm:$0xff]
        %v260 = vld [vmem:[%s5 + $0x38] sm:$0xff]
        %v261 = vld [vmem:[%s5 + $0x40] sm:$0xff]
        %v262 = vld [vmem:[%s5 + $0x48] sm:$0xff]
        %v263 = vld [vmem:[%s5 + $0x50] sm:$0xff]
        %v264 = vld [vmem:[%s5 + $0x58] sm:$0xff]
        %v265 = vld [vmem:[%s5 + $0x60] sm:$0xff]
        %v266 = vld [vmem:[%s5 + $0x68] sm:$0xff]
        %v267 = vld [vmem:[%s5 + $0x70] sm:$0xff]
        %v268 = vld [vmem:[%s5 + $0x78] sm:$0xff]
        %v269 = vld [vmem:[%s6] sm:$0x1]
        %v271 = vperm.slane %v269, 0
        %vm273 = vcmask 261120
        %v275 = vsel %vm273, %v252, 0
        %v278 = vsel %vm273, %v253, 0
        %v281 = vsel %vm273, %v254, 0
        %v284 = vsel %vm273, %v255, 0
        %v287 = vsel %vm273, %v256, 0
        %v290 = vsel %vm273, %v257, 0
        %v293 = vsel %vm273, %v258, 0
        %v296 = vsel %vm273, %v259, 0
        %v299 = vsel %vm273, %v260, 0
        %v302 = vsel %vm273, %v261, 0
        %v305 = vsel %vm273, %v262, 0
        %v308 = vsel %vm273, %v263, 0
        %v311 = vsel %vm273, %v264, 0
        %v314 = vsel %vm273, %v265, 0
        %v317 = vsel %vm273, %v266, 0
        %v320 = vsel %vm273, %v267, 0
        %v323 = vsel %vm273, %v268, 0
        %325 = vmatpush.xpose.msra.mxu0 %v323
        %326 = vmatpush.xpose.msra.mxu0 %v320
        %327 = vmatpush.xpose.msra.mxu0 %v317
        %328 = vmatpush.xpose.msra.mxu0 %v314
        %329 = vmatpush.xpose.msra.mxu0 %v311
        %330 = vmatpush.xpose.msra.mxu0 %v308
        %331 = vmatpush.xpose.msra.mxu0 %v305
        %332 = vmatpush.xpose.msra.mxu0 %v302
        %333 = vmatpush.xpose.msra.mxu0 %v299
        %334 = vmatpush.xpose.msra.mxu0 %v296
        %335 = vmatpush.xpose.msra.mxu0 %v293
        %336 = vmatpush.xpose.msra.mxu0 %v290
        %337 = vmatpush.xpose.msra.mxu0 %v287
        %338 = vmatpush.xpose.msra.mxu0 %v284
        %339 = vmatpush.xpose.msra.mxu0 %v281
        %340 = vmatpush.xpose.msra.mxu0 %v278
        %341 = vmatmul.f32.gmra.mxu0 %v275
        %v342 = vpop.f32.mrf.mxu0
        %v343 = vadd.f32 %v271, %v342
        %344 = vdwg.mxu0
        %345 = vst [vmem:[%s232] sm:$0xff] %v343
        %s346 = sand.u32 %s145, 1
        %s347 = scalar_lea.sflag [#allocation7], %s346
        %s348 = sand.u32 %s145, 1
        %s349 = smul.addr %s348, 8
        %s350 = scalar_lea.vmem [#allocation6], %s349
        // Predicated region
        $region37: #{tpu_custom_call.1} parent=35 // pred_check
          %p351 = pneg %p155
        $region38: #{tpu_custom_call.1} parent=35 // pred_check_branch
          %353 = sbr.rel (%p351) target = $region40
        $region39: #{tpu_custom_call.1} parent=35 // pred_region
          %355 = vsyncadd %s347, 0
          %s356 = smul.addr %s39, 8
          %s357 = scalar_lea.hbm %s7, %s356
          %s359 = sshll.u32 %s350, 4
          %s360 = int_to_ptr.vmem [resolvable:$true] %s359
          %s361 = sshll.u32 %s357, 4
          %s362 = int_to_ptr.hbm [resolvable:$true] %s361
          %364 = dma.vmem_to_hbm [thread:$0]  %s360, 128, %s362, %s347
        $region40: #{tpu_custom_call.1} parent=35 // pred_fallthru
          _
      $region36: #{tpu_custom_call.1} parent=5 // pred_fallthru
        _
      %p365 = scmp.le.s32.totalorder 2, %s34
      // Predicated region
      $region41: #{tpu_custom_call.1} parent=5 // pred_check
        %p366 = pneg %p365
      $region42: #{tpu_custom_call.1} parent=5 // pred_check_branch
        %368 = sbr.rel (%p366) target = $region44
      $region43: #{tpu_custom_call.1} parent=5 // pred_region
        %s369 = ssub.s32 %s34, 2
        // Predicated region
        $region45: #{tpu_custom_call.1} parent=43 // pred_check
          %p370 = pneg %p161
        $region46: #{tpu_custom_call.1} parent=43 // pred_check_branch
          %372 = sbr.rel (%p370) target = $region48
        $region47: #{tpu_custom_call.1} parent=43 // pred_region
          %s373 = sand.u32 %s146, 1
          %s374 = scalar_lea.sflag [#allocation7], %s373
          %s375 = sand.u32 %s146, 1
          %s376 = smul.addr %s375, 8
          %s377 = scalar_lea.vmem [#allocation6], %s376
          %379 = dma.done %s374, 128
        $region48: #{tpu_custom_call.1} parent=43 // pred_fallthru
          _
      $region44: #{tpu_custom_call.1} parent=5 // pred_fallthru
        _
    $region6: #{tpu_custom_call.1} parent=1 // loop_footer
      %s38 = sadd.s32 1, %s34
    $region7: #{tpu_custom_call.1} parent=1 // loop_footer_branch
      %33 = sbr.rel target = $region3
    $region8: #{tpu_custom_call.1} parent=1 // loop_exit
      _
    %380 = vsyncpa [#allocation7], 1
    %s381 = scalar_lea.sflag [#allocation7], 1
    %382 = vsyncpa %s381, 1

</llo_original>
